<compile_context>
chip_gen: v7x
topology: tpu7x:2x2x1
jax: 0.10.0
libtpu: 0.0.40
codegen_flags: <defaults>
</compile_context>

<pallas_src>
import functools

import jax
import jax.numpy as jnp
from jax.experimental import pallas as pl
from jax.experimental.pallas import tpu as pltpu


# ---------------------------------------------------------------------------
# Pallas kernel: one batch sample, lane-dense (C, H*W) slabs
# ---------------------------------------------------------------------------
def _block_kernel(x_ref, w1_ref, b1_ref, wd_ref, bd_ref, mask_ref,
                  w2_ref, b2_ref, o_ref, *, width, dw_bf16):
    # x_ref   : (1, 2C, HW)  one sample, channels on sublanes, HW on lanes
    # w1_ref  : (C, C)   bf16  pointwise #1 weight (BN scale folded), (out,in)
    # b1_ref  : (C, 1)   f32   folded BN bias #1
    # wd_ref  : (C, 9)   f32   depthwise 3x3 taps (BN scale folded)
    # bd_ref  : (C, 1)   f32   folded BN bias (depthwise stage)
    # mask_ref: (9, HW)  f32   0/1 border masks for the 9 depthwise taps
    # w2_ref  : (C, C)   bf16  pointwise #2 weight (dense, no scatter)
    # b2_ref  : (C, 1)   f32   folded BN bias #2
    # o_ref   : (1, C, 2*HW)  lanes [0:HW]=x1 passthrough, [HW:2HW]=branch2;
    #                         row-major equal to shuffled (2C, HW).
    C2, HW = x_ref.shape[1], x_ref.shape[2]
    C = C2 // 2

    # ---- x1 passthrough: single dense, lane-aligned store (bit-exact while
    #      out dtype == in dtype; replaces the old C masked single-row stores)
    o_ref[0, :, :HW] = x_ref[0, :C, :]

    # branch2 input half (8-sublane-aligned slice here), cast once for the MXU
    x2 = x_ref[0, C:, :].astype(jnp.bfloat16)                    # (C, HW)

    # ---- pointwise conv #1 (+ folded BN) + ReLU:  t = relu(W1 @ x2 + b1) ----
    t = jnp.dot(w1_ref[...], x2,
                preferred_element_type=jnp.float32) + b1_ref[...]
    t = jnp.maximum(t, 0.0)                                      # (C, HW) f32

    # ---- depthwise 3x3, stride 1, pad 1: lane rolls + border masks ----------
    # Neighbour (dh, dw) lives at lane offset dh*W + dw in the flat (C, HW)
    # layout; pltpu.roll (XLU slot) brings it in place and a precomputed 0/1
    # mask zeroes out-of-image positions.  The center tap (k == 4) needs no
    # mask.  Optionally run the elementwise math in bf16 (v6e/v7x VALU packing)
    # while accumulating in f32; default f32 keeps v5e on its native VPU path.
    dw_dtype = jnp.bfloat16 if dw_bf16 else jnp.float32
    t = t.astype(dw_dtype)
    acc = jnp.zeros((C, HW), jnp.float32)
    k = 0
    for dh in (-1, 0, 1):
        for dw in (-1, 0, 1):
            off = dh * width + dw
            shifted = t if off == 0 else pltpu.roll(t, shift=(-off) % HW, axis=1)
            tap = wd_ref[:, k:k + 1].astype(dw_dtype)            # (C, 1)
            term = shifted * tap
            if k != 4:                                           # border taps only
                term = term * mask_ref[k:k + 1, :].astype(dw_dtype)
            acc = acc + term                                     # f32 accumulate
            k += 1
    u = acc + bd_ref[...]                                        # (C, HW) f32

    # ---- pointwise conv #2 (+ folded BN) + ReLU: dense (C,C)@(C,HW) ---------
    y2 = jnp.dot(w2_ref[...], u.astype(jnp.bfloat16),
                 preferred_element_type=jnp.float32) + b2_ref[...]
    y2 = jnp.maximum(y2, 0.0)                                    # (C, HW)
    # single dense store into the upper HW lanes (128-aligned offset)
    o_ref[0, :, HW:] = y2.astype(o_ref.dtype)


def _dw_border_masks(H, W):
    """0/1 validity masks (9, H*W) for the 3x3 depthwise taps (built at init)."""
    h = jnp.repeat(jnp.arange(H), W)
    w = jnp.tile(jnp.arange(W), H)
    masks = []
    for dh in (-1, 0, 1):
        for dw in (-1, 0, 1):
            valid = ((h + dh >= 0) & (h + dh < H) &
                     (w + dw >= 0) & (w + dw < W))
            masks.append(valid)
    return jnp.stack(masks).astype(jnp.float32)                  # (9, HW)


# ---------------------------------------------------------------------------
# Full block forward (stride=1): split -> branch2 -> concat -> ChannelShuffle
# ---------------------------------------------------------------------------
def shufflenet_v2_block(x_nchw, params, stride=1, dw_bf16=False):
    if stride != 1:
        # TODO(synk): stride=2 variant (branch1 + strided depthwise) not
        # implemented in the Pallas path.
        raise NotImplementedError("only the stride=1 block is implemented")
    N, C2, H, W = x_nchw.shape
    C = C2 // 2
    HW = H * W

    x = x_nchw.reshape(N, C2, HW)                 # metadata-only reshape

    kernel = functools.partial(_block_kernel, width=W, dw_bf16=dw_bf16)
    grid_spec = pltpu.PrefetchScalarGridSpec(
        num_scalar_prefetch=0,
        grid=(N,),
        in_specs=[
            pl.BlockSpec((1, C2, HW), lambda n: (n, 0, 0)),   # x (one sample)
            pl.BlockSpec((C, C), lambda n: (0, 0)),           # w1
            pl.BlockSpec((C, 1), lambda n: (0, 0)),           # b1
            pl.BlockSpec((C, 9), lambda n: (0, 0)),           # depthwise taps
            pl.BlockSpec((C, 1), lambda n: (0, 0)),           # bd
            pl.BlockSpec((9, HW), lambda n: (0, 0)),          # border masks
            pl.BlockSpec((C, C), lambda n: (0, 0)),           # w2 (dense)
            pl.BlockSpec((C, 1), lambda n: (0, 0)),           # b2
        ],
        out_specs=pl.BlockSpec((1, C, 2 * HW), lambda n: (n, 0, 0)),
    )
    out = pl.pallas_call(
        kernel,
        out_shape=jax.ShapeDtypeStruct((N, C, 2 * HW), x_nchw.dtype),
        grid_spec=grid_spec,
        compiler_params=pltpu.CompilerParams(
            dimension_semantics=("parallel",)),
    )(x, params["w1"], params["b1"], params["wd"], params["bd"],
      params["dwmask"], params["w2"], params["b2"])

    # (N, C, 2*HW) viewed row-major IS (N, 2C, HW) with channel index 2i+j
    # (even = x1 passthrough, odd = branch2), i.e. ChannelShuffle(groups=2).
    # This reshape is metadata-only.
    return out.reshape(N, C2, H, W)


# ---------------------------------------------------------------------------
# Deterministic parameter init (PyTorch shapes) + BN folding (eval mode)
# ---------------------------------------------------------------------------
def _init_conv_bn(key, c_out, c_in, ksize):
    kw, kg, kb, km, kv = jax.random.split(key, 5)
    w = 0.2 * jax.random.normal(kw, (c_out, c_in) + ksize, jnp.float32)
    gamma = jax.random.uniform(kg, (c_out,), jnp.float32, 0.5, 1.5)
    beta = 0.1 * jax.random.normal(kb, (c_out,), jnp.float32)
    mean = 0.1 * jax.random.normal(km, (c_out,), jnp.float32)
    var = jax.random.uniform(kv, (c_out,), jnp.float32, 0.5, 1.5)
    return dict(w=w, gamma=gamma, beta=beta, mean=mean, var=var)


def init_params(key, split_ch, height, width, eps=1e-5):
    k1, k2, k3 = jax.random.split(key, 3)
    pw1 = _init_conv_bn(k1, split_ch, split_ch, (1, 1))   # PointwiseConvBN2d
    dwc = _init_conv_bn(k2, split_ch, 1, (3, 3))          # DepthwiseConvBN2d
    pw2 = _init_conv_bn(k3, split_ch, split_ch, (1, 1))   # PointwiseConvBN2d

    def scale_bias(p):
        s = p["gamma"] / jnp.sqrt(p["var"] + eps)
        return s, p["beta"] - p["mean"] * s

    s1, b1 = scale_bias(pw1)
    sd, bd = scale_bias(dwc)
    s2, b2 = scale_bias(pw2)

    # pointwise conv (out,in,1,1) -> (out,in), BN scale folded; stored bf16 for
    # the MXU (accumulation stays f32 inside the kernel).
    w1 = (pw1["w"][:, :, 0, 0] * s1[:, None]).astype(jnp.bfloat16)
    w2 = (pw2["w"][:, :, 0, 0] * s2[:, None]).astype(jnp.bfloat16)
    # depthwise conv (C,1,3,3) -> (C,9) taps, BN scale folded.
    wd = (dwc["w"][:, 0] * sd[:, None, None]).reshape(split_ch, 9)

    return dict(w1=w1, b1=b1[:, None], wd=wd, bd=bd[:, None],
                w2=w2, b2=b2[:, None],
                dwmask=_dw_border_masks(height, width))   # hoisted out of call


# ---------------------------------------------------------------------------
# Pure-JAX reference (same math, no Pallas) for a correctness check
# ---------------------------------------------------------------------------
def _ref_forward(x_nchw, p):
    N, C2, H, W = x_nchw.shape
    C = C2 // 2
    x = x_nchw.reshape(N, C2, H * W)
    x1, x2 = x[:, :C], x[:, C:]

    t = jnp.einsum("oi,nij->noj", p["w1"], x2.astype(jnp.bfloat16),
                   preferred_element_type=jnp.float32) + p["b1"]
    t = jnp.maximum(t, 0.0)

    tsp = t.reshape(N, C, H, W)
    tp = jnp.pad(tsp, ((0, 0), (0, 0), (1, 1), (1, 1)))
    wd = p["wd"].reshape(C, 3, 3)
    acc = jnp.zeros_like(tsp)
    for dh in range(3):
        for dw in range(3):
            acc = acc + tp[:, :, dh:dh + H, dw:dw + W] * wd[None, :, dh, dw, None, None]
    u = (acc + p["bd"][None, :, :, None]).reshape(N, C, H * W)

    y2 = jnp.einsum("oi,nij->noj", p["w2"], u.astype(jnp.bfloat16),
                    preferred_element_type=jnp.float32) + p["b2"]
    y2 = jnp.maximum(y2, 0.0)

    # concat + ChannelShuffle(groups=2): out[:,2i]=x1[:,i], out[:,2i+1]=y2[:,i]
    out = jnp.stack([x1, y2], axis=2).reshape(N, C2, H, W)
    return out


if __name__ == "__main__":
    N, C2, H, W = 2, 16, 16, 16          # input_ch == output_ch == 16, stride=1
    key = jax.random.PRNGKey(0)
    k_x, k_p = jax.random.split(key)
    x = jax.random.normal(k_x, (N, C2, H, W), jnp.float32)
    params = init_params(k_p, split_ch=C2 // 2, height=H, width=W)

    out = jax.block_until_ready(shufflenet_v2_block(x, params, stride=1))
    ref = jax.block_until_ready(_ref_forward(x, params))

    assert out.shape == (N, C2, H, W), out.shape
    max_err = float(jnp.max(jnp.abs(out - ref)))
    # Both kernel and reference use bf16 MXU inputs with f32 accumulation and
    # f32 depthwise math (dw_bf16=False), so 2e-3 covers bf16 input rounding.
    assert jnp.allclose(out, ref, atol=2e-3, rtol=2e-3), max_err

    print("KERNEL_OK")
</pallas_src>

<mosaic_0001>
module attributes {stable_mosaic.version = 11 : i64} {
  func.func @_block_kernel(%arg0: i32, %arg1: memref<1x16x256xf32, #tpu.memory_space<vmem>>, %arg2: memref<8x8xbf16, #tpu.memory_space<vmem>>, %arg3: memref<8x1xf32, #tpu.memory_space<vmem>>, %arg4: memref<8x9xf32, #tpu.memory_space<vmem>>, %arg5: memref<8x1xf32, #tpu.memory_space<vmem>>, %arg6: memref<9x256xf32, #tpu.memory_space<vmem>>, %arg7: memref<8x8xbf16, #tpu.memory_space<vmem>>, %arg8: memref<8x1xf32, #tpu.memory_space<vmem>>, %arg9: memref<1x8x512xf32, #tpu.memory_space<vmem>>) attributes {dimension_semantics = [#tpu.dimension_semantics<parallel>], iteration_bounds = array<i64: 2>, scalar_prefetch = 0 : i64, scratch_operands = 0 : i64, tpu.core_type = #tpu.core_type<tc>, window_params = [{transform_indices = @transform_0, window_bounds = array<i64: 1, 16, 256>}, {pipeline_mode = #tpu.pipeline_mode<synchronous>, transform_indices = @transform_1, window_bounds = array<i64: 8, 8>}, {pipeline_mode = #tpu.pipeline_mode<synchronous>, transform_indices = @transform_2, window_bounds = array<i64: 8, 1>}, {pipeline_mode = #tpu.pipeline_mode<synchronous>, transform_indices = @transform_3, window_bounds = array<i64: 8, 9>}, {pipeline_mode = #tpu.pipeline_mode<synchronous>, transform_indices = @transform_4, window_bounds = array<i64: 8, 1>}, {pipeline_mode = #tpu.pipeline_mode<synchronous>, transform_indices = @transform_5, window_bounds = array<i64: 9, 256>}, {pipeline_mode = #tpu.pipeline_mode<synchronous>, transform_indices = @transform_6, window_bounds = array<i64: 8, 8>}, {pipeline_mode = #tpu.pipeline_mode<synchronous>, transform_indices = @transform_7, window_bounds = array<i64: 8, 1>}, {transform_indices = @transform_8, window_bounds = array<i64: 1, 8, 512>}]} {
    %c0 = arith.constant 0 : index
    %c0_0 = arith.constant 0 : index
    %c0_1 = arith.constant 0 : index
    %0 = vector.load %arg1[%c0, %c0_0, %c0_1] : memref<1x16x256xf32, #tpu.memory_space<vmem>>, vector<1x8x256xf32>
    %1 = vector.shape_cast %0 : vector<1x8x256xf32> to vector<8x256xf32>
    %c0_2 = arith.constant 0 : index
    %c0_3 = arith.constant 0 : index
    %c0_4 = arith.constant 0 : index
    %2 = vector.load %arg9[%c0_2, %c0_3, %c0_4] : memref<1x8x512xf32, #tpu.memory_space<vmem>>, vector<1x8x256xf32>
    %3 = vector.shape_cast %2 : vector<1x8x256xf32> to vector<8x256xf32>
    %4 = vector.shape_cast %1 : vector<8x256xf32> to vector<1x8x256xf32>
    tpu.vector_store %arg9[%c0_2, %c0_3, %c0_4], %4 {strides = array<i32>} : memref<1x8x512xf32, #tpu.memory_space<vmem>>, vector<1x8x256xf32>,
    %c0_5 = arith.constant 0 : index
    %c8 = arith.constant 8 : index
    %c0_6 = arith.constant 0 : index
    %5 = vector.load %arg1[%c0_5, %c8, %c0_6] : memref<1x16x256xf32, #tpu.memory_space<vmem>>, vector<1x8x256xf32>
    %6 = vector.shape_cast %5 : vector<1x8x256xf32> to vector<8x256xf32>
    %7 = arith.truncf %6 : vector<8x256xf32> to vector<8x256xbf16>
    %c0_7 = arith.constant 0 : index
    %c0_8 = arith.constant 0 : index
    %8 = vector.load %arg2[%c0_7, %c0_8] : memref<8x8xbf16, #tpu.memory_space<vmem>>, vector<8x8xbf16>
    %cst = arith.constant dense<0.000000e+00> : vector<8x256xf32>
    %9 = tpu.matmul %8, %7, %cst {dimension_numbers = #tpu.dot_dimension_numbers<[1], [0], [0], [1], [0, 0, 1, 1], [], []>} : vector<8x8xbf16>, vector<8x256xbf16>, vector<8x256xf32> -> vector<8x256xf32>
    %c0_9 = arith.constant 0 : index
    %c0_10 = arith.constant 0 : index
    %10 = vector.load %arg3[%c0_9, %c0_10] : memref<8x1xf32, #tpu.memory_space<vmem>>, vector<8x1xf32>
    %11 = vector.broadcast %10 : vector<8x1xf32> to vector<8x256xf32>
    %12 = arith.addf %9, %11 : vector<8x256xf32>
    %cst_11 = arith.constant 0.000000e+00 : f32
    %13 = vector.broadcast %cst_11 : f32 to vector<8x256xf32>
    %14 = arith.maximumf %12, %13 : vector<8x256xf32>
    %cst_12 = arith.constant 0.000000e+00 : f32
    %15 = vector.broadcast %cst_12 : f32 to vector<8x256xf32>
    %c17_i32 = arith.constant 17 : i32
    %16 = tpu.dynamic_rotate %14 by %c17_i32 dim 1 : vector<8x256xf32>, i32 -> vector<8x256xf32>
    %c0_13 = arith.constant 0 : index
    %c0_14 = arith.constant 0 : index
    %17 = vector.load %arg4[%c0_13, %c0_14] : memref<8x9xf32, #tpu.memory_space<vmem>>, vector<8x1xf32>
    %18 = vector.broadcast %17 : vector<8x1xf32> to vector<8x256xf32>
    %19 = arith.mulf %16, %18 : vector<8x256xf32>
    %c0_15 = arith.constant 0 : index
    %c0_16 = arith.constant 0 : index
    %20 = vector.load %arg6[%c0_15, %c0_16] : memref<9x256xf32, #tpu.memory_space<vmem>>, vector<1x256xf32>
    %21 = vector.broadcast %20 : vector<1x256xf32> to vector<8x256xf32>
    %22 = arith.mulf %19, %21 : vector<8x256xf32>
    %23 = arith.addf %15, %22 : vector<8x256xf32>
    %c16_i32 = arith.constant 16 : i32
    %24 = tpu.dynamic_rotate %14 by %c16_i32 dim 1 : vector<8x256xf32>, i32 -> vector<8x256xf32>
    %c0_17 = arith.constant 0 : index
    %c1 = arith.constant 1 : index
    %25 = vector.load %arg4[%c0_17, %c1] : memref<8x9xf32, #tpu.memory_space<vmem>>, vector<8x1xf32>
    %26 = vector.broadcast %25 : vector<8x1xf32> to vector<8x256xf32>
    %27 = arith.mulf %24, %26 : vector<8x256xf32>
    %c1_18 = arith.constant 1 : index
    %c0_19 = arith.constant 0 : index
    %28 = vector.load %arg6[%c1_18, %c0_19] : memref<9x256xf32, #tpu.memory_space<vmem>>, vector<1x256xf32>
    %29 = vector.broadcast %28 : vector<1x256xf32> to vector<8x256xf32>
    %30 = arith.mulf %27, %29 : vector<8x256xf32>
    %31 = arith.addf %23, %30 : vector<8x256xf32>
    %c15_i32 = arith.constant 15 : i32
    %32 = tpu.dynamic_rotate %14 by %c15_i32 dim 1 : vector<8x256xf32>, i32 -> vector<8x256xf32>
    %c0_20 = arith.constant 0 : index
    %c2 = arith.constant 2 : index
    %33 = vector.load %arg4[%c0_20, %c2] : memref<8x9xf32, #tpu.memory_space<vmem>>, vector<8x1xf32>
    %34 = vector.broadcast %33 : vector<8x1xf32> to vector<8x256xf32>
    %35 = arith.mulf %32, %34 : vector<8x256xf32>
    %c2_21 = arith.constant 2 : index
    %c0_22 = arith.constant 0 : index
    %36 = vector.load %arg6[%c2_21, %c0_22] : memref<9x256xf32, #tpu.memory_space<vmem>>, vector<1x256xf32>
    %37 = vector.broadcast %36 : vector<1x256xf32> to vector<8x256xf32>
    %38 = arith.mulf %35, %37 : vector<8x256xf32>
    %39 = arith.addf %31, %38 : vector<8x256xf32>
    %c1_i32 = arith.constant 1 : i32
    %40 = tpu.dynamic_rotate %14 by %c1_i32 dim 1 : vector<8x256xf32>, i32 -> vector<8x256xf32>
    %c0_23 = arith.constant 0 : index
    %c3 = arith.constant 3 : index
    %41 = vector.load %arg4[%c0_23, %c3] : memref<8x9xf32, #tpu.memory_space<vmem>>, vector<8x1xf32>
    %42 = vector.broadcast %41 : vector<8x1xf32> to vector<8x256xf32>
    %43 = arith.mulf %40, %42 : vector<8x256xf32>
    %c3_24 = arith.constant 3 : index
    %c0_25 = arith.constant 0 : index
    %44 = vector.load %arg6[%c3_24, %c0_25] : memref<9x256xf32, #tpu.memory_space<vmem>>, vector<1x256xf32>
    %45 = vector.broadcast %44 : vector<1x256xf32> to vector<8x256xf32>
    %46 = arith.mulf %43, %45 : vector<8x256xf32>
    %47 = arith.addf %39, %46 : vector<8x256xf32>
    %c0_26 = arith.constant 0 : index
    %c4 = arith.constant 4 : index
    %48 = vector.load %arg4[%c0_26, %c4] : memref<8x9xf32, #tpu.memory_space<vmem>>, vector<8x1xf32>
    %49 = vector.broadcast %48 : vector<8x1xf32> to vector<8x256xf32>
    %50 = arith.mulf %14, %49 : vector<8x256xf32>
    %51 = arith.addf %47, %50 : vector<8x256xf32>
    %c255_i32 = arith.constant 255 : i32
    %52 = tpu.dynamic_rotate %14 by %c255_i32 dim 1 : vector<8x256xf32>, i32 -> vector<8x256xf32>
    %c0_27 = arith.constant 0 : index
    %c5 = arith.constant 5 : index
    %53 = vector.load %arg4[%c0_27, %c5] : memref<8x9xf32, #tpu.memory_space<vmem>>, vector<8x1xf32>
    %54 = vector.broadcast %53 : vector<8x1xf32> to vector<8x256xf32>
    %55 = arith.mulf %52, %54 : vector<8x256xf32>
    %c5_28 = arith.constant 5 : index
    %c0_29 = arith.constant 0 : index
    %56 = vector.load %arg6[%c5_28, %c0_29] : memref<9x256xf32, #tpu.memory_space<vmem>>, vector<1x256xf32>
    %57 = vector.broadcast %56 : vector<1x256xf32> to vector<8x256xf32>
    %58 = arith.mulf %55, %57 : vector<8x256xf32>
    %59 = arith.addf %51, %58 : vector<8x256xf32>
    %c241_i32 = arith.constant 241 : i32
    %60 = tpu.dynamic_rotate %14 by %c241_i32 dim 1 : vector<8x256xf32>, i32 -> vector<8x256xf32>
    %c0_30 = arith.constant 0 : index
    %c6 = arith.constant 6 : index
    %61 = vector.load %arg4[%c0_30, %c6] : memref<8x9xf32, #tpu.memory_space<vmem>>, vector<8x1xf32>
    %62 = vector.broadcast %61 : vector<8x1xf32> to vector<8x256xf32>
    %63 = arith.mulf %60, %62 : vector<8x256xf32>
    %c6_31 = arith.constant 6 : index
    %c0_32 = arith.constant 0 : index
    %64 = vector.load %arg6[%c6_31, %c0_32] : memref<9x256xf32, #tpu.memory_space<vmem>>, vector<1x256xf32>
    %65 = vector.broadcast %64 : vector<1x256xf32> to vector<8x256xf32>
    %66 = arith.mulf %63, %65 : vector<8x256xf32>
    %67 = arith.addf %59, %66 : vector<8x256xf32>
    %c240_i32 = arith.constant 240 : i32
    %68 = tpu.dynamic_rotate %14 by %c240_i32 dim 1 : vector<8x256xf32>, i32 -> vector<8x256xf32>
    %c0_33 = arith.constant 0 : index
    %c7 = arith.constant 7 : index
    %69 = vector.load %arg4[%c0_33, %c7] : memref<8x9xf32, #tpu.memory_space<vmem>>, vector<8x1xf32>
    %70 = vector.broadcast %69 : vector<8x1xf32> to vector<8x256xf32>
    %71 = arith.mulf %68, %70 : vector<8x256xf32>
    %c7_34 = arith.constant 7 : index
    %c0_35 = arith.constant 0 : index
    %72 = vector.load %arg6[%c7_34, %c0_35] : memref<9x256xf32, #tpu.memory_space<vmem>>, vector<1x256xf32>
    %73 = vector.broadcast %72 : vector<1x256xf32> to vector<8x256xf32>
    %74 = arith.mulf %71, %73 : vector<8x256xf32>
    %75 = arith.addf %67, %74 : vector<8x256xf32>
    %c239_i32 = arith.constant 239 : i32
    %76 = tpu.dynamic_rotate %14 by %c239_i32 dim 1 : vector<8x256xf32>, i32 -> vector<8x256xf32>
    %c0_36 = arith.constant 0 : index
    %c8_37 = arith.constant 8 : index
    %77 = vector.load %arg4[%c0_36, %c8_37] : memref<8x9xf32, #tpu.memory_space<vmem>>, vector<8x1xf32>
    %78 = vector.broadcast %77 : vector<8x1xf32> to vector<8x256xf32>
    %79 = arith.mulf %76, %78 : vector<8x256xf32>
    %c8_38 = arith.constant 8 : index
    %c0_39 = arith.constant 0 : index
    %80 = vector.load %arg6[%c8_38, %c0_39] : memref<9x256xf32, #tpu.memory_space<vmem>>, vector<1x256xf32>
    %81 = vector.broadcast %80 : vector<1x256xf32> to vector<8x256xf32>
    %82 = arith.mulf %79, %81 : vector<8x256xf32>
    %83 = arith.addf %75, %82 : vector<8x256xf32>
    %c0_40 = arith.constant 0 : index
    %c0_41 = arith.constant 0 : index
    %84 = vector.load %arg5[%c0_40, %c0_41] : memref<8x1xf32, #tpu.memory_space<vmem>>, vector<8x1xf32>
    %85 = vector.broadcast %84 : vector<8x1xf32> to vector<8x256xf32>
    %86 = arith.addf %83, %85 : vector<8x256xf32>
    %c0_42 = arith.constant 0 : index
    %c0_43 = arith.constant 0 : index
    %87 = vector.load %arg7[%c0_42, %c0_43] : memref<8x8xbf16, #tpu.memory_space<vmem>>, vector<8x8xbf16>
    %88 = arith.truncf %86 : vector<8x256xf32> to vector<8x256xbf16>
    %cst_44 = arith.constant dense<0.000000e+00> : vector<8x256xf32>
    %89 = tpu.matmul %87, %88, %cst_44 {dimension_numbers = #tpu.dot_dimension_numbers<[1], [0], [0], [1], [0, 0, 1, 1], [], []>} : vector<8x8xbf16>, vector<8x256xbf16>, vector<8x256xf32> -> vector<8x256xf32>
    %c0_45 = arith.constant 0 : index
    %c0_46 = arith.constant 0 : index
    %90 = vector.load %arg8[%c0_45, %c0_46] : memref<8x1xf32, #tpu.memory_space<vmem>>, vector<8x1xf32>
    %91 = vector.broadcast %90 : vector<8x1xf32> to vector<8x256xf32>
    %92 = arith.addf %89, %91 : vector<8x256xf32>
    %cst_47 = arith.constant 0.000000e+00 : f32
    %93 = vector.broadcast %cst_47 : f32 to vector<8x256xf32>
    %94 = arith.maximumf %92, %93 : vector<8x256xf32>
    %c0_48 = arith.constant 0 : index
    %c0_49 = arith.constant 0 : index
    %c256 = arith.constant 256 : index
    %95 = vector.load %arg9[%c0_48, %c0_49, %c256] : memref<1x8x512xf32, #tpu.memory_space<vmem>>, vector<1x8x256xf32>
    %96 = vector.shape_cast %95 : vector<1x8x256xf32> to vector<8x256xf32>
    %97 = vector.shape_cast %94 : vector<8x256xf32> to vector<1x8x256xf32>
    tpu.vector_store %arg9[%c0_48, %c0_49, %c256], %97 {strides = array<i32>} : memref<1x8x512xf32, #tpu.memory_space<vmem>>, vector<1x8x256xf32>,
    return
  }
  func.func @transform_0(%arg0: i32) -> (i32, i32, i32) {
    %c0_i32 = arith.constant 0 : i32
    %c0_i32_0 = arith.constant 0 : i32
    %c0_i32_1 = arith.constant 0 : i32
    return %arg0, %c0_i32, %c0_i32_0 : i32, i32, i32
  }
  func.func @transform_1(%arg0: i32) -> (i32, i32) {
    %c0_i32 = arith.constant 0 : i32
    %c0_i32_0 = arith.constant 0 : i32
    %c0_i32_1 = arith.constant 0 : i32
    return %c0_i32, %c0_i32_0 : i32, i32
  }
  func.func @transform_2(%arg0: i32) -> (i32, i32) {
    %c0_i32 = arith.constant 0 : i32
    %c0_i32_0 = arith.constant 0 : i32
    %c0_i32_1 = arith.constant 0 : i32
    return %c0_i32, %c0_i32_0 : i32, i32
  }
  func.func @transform_3(%arg0: i32) -> (i32, i32) {
    %c0_i32 = arith.constant 0 : i32
    %c0_i32_0 = arith.constant 0 : i32
    %c0_i32_1 = arith.constant 0 : i32
    return %c0_i32, %c0_i32_0 : i32, i32
  }
  func.func @transform_4(%arg0: i32) -> (i32, i32) {
    %c0_i32 = arith.constant 0 : i32
    %c0_i32_0 = arith.constant 0 : i32
    %c0_i32_1 = arith.constant 0 : i32
    return %c0_i32, %c0_i32_0 : i32, i32
  }
  func.func @transform_5(%arg0: i32) -> (i32, i32) {
    %c0_i32 = arith.constant 0 : i32
    %c0_i32_0 = arith.constant 0 : i32
    %c0_i32_1 = arith.constant 0 : i32
    return %c0_i32, %c0_i32_0 : i32, i32
  }
  func.func @transform_6(%arg0: i32) -> (i32, i32) {
    %c0_i32 = arith.constant 0 : i32
    %c0_i32_0 = arith.constant 0 : i32
    %c0_i32_1 = arith.constant 0 : i32
    return %c0_i32, %c0_i32_0 : i32, i32
  }
  func.func @transform_7(%arg0: i32) -> (i32, i32) {
    %c0_i32 = arith.constant 0 : i32
    %c0_i32_0 = arith.constant 0 : i32
    %c0_i32_1 = arith.constant 0 : i32
    return %c0_i32, %c0_i32_0 : i32, i32
  }
  func.func @transform_8(%arg0: i32) -> (i32, i32, i32) {
    %c0_i32 = arith.constant 0 : i32
    %c0_i32_0 = arith.constant 0 : i32
    %c0_i32_1 = arith.constant 0 : i32
    return %arg0, %c0_i32, %c0_i32_0 : i32, i32, i32
  }
}

</mosaic_0001>

<llo_original>
// kernel: tpu_custom_call.1
$region0: #{tpu_custom_call.1}
  #allocation0 [shape = 'u32[]', space=smem, size = 0x4, offset = 0x4, fixed_abs, tag = 'smem constant byte address 0x4 - core index']
  #allocation1 [shape = 'u32[144,128]{1,0:T(1,128)}', space=vmem, size = 0x12000, scoped, tag = 'internal scratch']
  %s0 = inlined_call_operand.hbm [shape: f32[2,16,256], index: 0, kind: input, shape index: {}]
  %s1 = inlined_call_operand.vmem [shape: bf16[8,8], index: 1, kind: input, shape index: {}]
  %s2 = inlined_call_operand.vmem [shape: f32[8,1], index: 2, kind: input, shape index: {}]
  %s3 = inlined_call_operand.vmem [shape: f32[8,9], index: 3, kind: input, shape index: {}]
  %s4 = inlined_call_operand.vmem [shape: f32[8,1], index: 4, kind: input, shape index: {}]
  %s5 = inlined_call_operand.vmem [shape: f32[9,256], index: 5, kind: input, shape index: {}]
  %s6 = inlined_call_operand.vmem [shape: bf16[8,8], index: 6, kind: input, shape index: {}]
  %s7 = inlined_call_operand.vmem [shape: f32[8,1], index: 7, kind: input, shape index: {}]
  %s8 = inlined_call_operand.hbm [shape: f32[2,8,512], index: 8, kind: output, shape index: {}]
  %s9 = sld [smem:[#allocation0]]
  $region69: #{tpu_custom_call.1} parent=0
    _
  %s11 = ssub.s32 1, %s9
  %s12 = scalar_select 0, %s11, %s9
  $region1: #{tpu_custom_call.1} parent=0
    #allocation2 [shape = 'u8[32768]{0}', space=vmem, size = 0x8000, scoped, tag = 'input window, operand 0']
    #allocation3 [shape = 's32[2]{0}', space=sflag, size = 0x8, scoped, tag = 'scoped memory for tpu_custom_call.1']
    #allocation4 [shape = 's32[2]{0}', space=sflag, size = 0x8, scoped, tag = 'scoped memory for tpu_custom_call.1']
    #allocation5 [shape = 'u8[32768]{0}', space=vmem, size = 0x8000, scoped, tag = 'output window, operand 0']
    %13 = vsyncpa [#allocation3], 0
    %s14 = scalar_lea.sflag [#allocation3], 1
    %15 = vsyncpa %s14, 0
    %16 = vsyncpa [#allocation4], 0
    %s17 = scalar_lea.sflag [#allocation4], 1
    %18 = vsyncpa %s17, 0
    loop: start=0, step=1, limit=4
    $region2: #{tpu_custom_call.1} parent=1 // loop_pre_header
      _
    $region3: #{tpu_custom_call.1} parent=1 // loop_header
      %s20 = sphi 0, %s24
      %p21 = scmp.ge.s32.totalorder %s20, 4
      %s30 = sphi 0, %s32
      %s33 = sphi 0, %s30
      %s34 = sphi 0, %s33
      %s50 = sphi 0, %s34
      %s54 = sphi 0, %s54
      %s56 = sphi 0, %s54
      %s57 = sphi 0, %s56
      %s71 = sphi 0, %s57
      %s75 = sphi 0, %s75
      %s77 = sphi 0, %s75
      %s78 = sphi 0, %s77
      %s92 = sphi 0, %s78
      %s96 = sphi 0, %s96
      %s98 = sphi 0, %s96
      %s99 = sphi 0, %s98
      %s113 = sphi 0, %s99
      %s117 = sphi 0, %s117
      %s119 = sphi 0, %s117
      %s120 = sphi 0, %s119
      %s134 = sphi 0, %s120
      %s138 = sphi 0, %s138
      %s140 = sphi 0, %s138
      %s141 = sphi 0, %s140
      %s155 = sphi 0, %s141
      %s159 = sphi 0, %s159
      %s161 = sphi 0, %s159
      %s162 = sphi 0, %s161
      %s176 = sphi 0, %s162
      %s180 = sphi 0, %s180
      %s182 = sphi 0, %s180
      %s183 = sphi 0, %s182
      %s197 = sphi 0, %s183
      %s203 = sphi 0, %s205
      %s206 = sphi 0, %s203
      %s207 = sphi 0, %s206
      %s223 = sphi 0, %s207
    $region4: #{tpu_custom_call.1} parent=1 // loop_header_branch
      %23 = sbr.rel (%p21) target = $region8
    $region5: #{tpu_custom_call.1} parent=1 // loop_body
      %s25 = ssub.s32 %s20, 1
      %s26 = ssub.s32 %s20, 2
      %s27 = sadd.s32 %s20, 1
      %s28 = ssub.s32 %s20, %s27
      %p29 = scmp.eq.s32.totalorder %s28, 0
      %s31 = sadd.s32 %s30, 1
      %s32 = scalar_select %p29, %s30, %s31
      %p35 = pneg %p29
      %p36 = scmp.eq.s32.totalorder %s20, 1
      %p37 = por %p35, %p36
      %p38 = scmp.ne.s32.totalorder %s30, %s33
      %p39 = scmp.eq.s32.totalorder %s20, 0
      %p40 = por %p38, %p39
      %p41 = scmp.ne.s32.totalorder %s30, %s33
      %p42 = scmp.eq.s32.totalorder %s25, 1
      %p43 = por %p41, %p42
      %p44 = scmp.ne.s32.totalorder %s33, %s34
      %p45 = scmp.eq.s32.totalorder %s25, 0
      %p46 = por %p44, %p45
      %p47 = scmp.ne.s32.totalorder %s33, %s34
      %p48 = scmp.eq.s32.totalorder %s26, 1
      %p49 = por %p47, %p48
      %p51 = scmp.ne.s32.totalorder %s34, %s50
      %p52 = scmp.eq.s32.totalorder %s26, 0
      %p53 = por %p51, %p52
      %s55 = sadd.s32 %s54, 1
      %p58 = scmp.eq.s32.totalorder %s20, 1
      %p59 = scmp.ne.s32.totalorder %s54, %s56
      %p60 = scmp.eq.s32.totalorder %s20, 0
      %p61 = por %p59, %p60
      %p62 = scmp.ne.s32.totalorder %s54, %s56
      %p63 = scmp.eq.s32.totalorder %s25, 1
      %p64 = por %p62, %p63
      %p65 = scmp.ne.s32.totalorder %s56, %s57
      %p66 = scmp.eq.s32.totalorder %s25, 0
      %p67 = por %p65, %p66
      %p68 = scmp.ne.s32.totalorder %s56, %s57
      %p69 = scmp.eq.s32.totalorder %s26, 1
      %p70 = por %p68, %p69
      %p72 = scmp.ne.s32.totalorder %s57, %s71
      %p73 = scmp.eq.s32.totalorder %s26, 0
      %p74 = por %p72, %p73
      %s76 = sadd.s32 %s75, 1
      %p79 = scmp.eq.s32.totalorder %s20, 1
      %p80 = scmp.ne.s32.totalorder %s75, %s77
      %p81 = scmp.eq.s32.totalorder %s20, 0
      %p82 = por %p80, %p81
      %p83 = scmp.ne.s32.totalorder %s75, %s77
      %p84 = scmp.eq.s32.totalorder %s25, 1
      %p85 = por %p83, %p84
      %p86 = scmp.ne.s32.totalorder %s77, %s78
      %p87 = scmp.eq.s32.totalorder %s25, 0
      %p88 = por %p86, %p87
      %p89 = scmp.ne.s32.totalorder %s77, %s78
      %p90 = scmp.eq.s32.totalorder %s26, 1
      %p91 = por %p89, %p90
      %p93 = scmp.ne.s32.totalorder %s78, %s92
      %p94 = scmp.eq.s32.totalorder %s26, 0
      %p95 = por %p93, %p94
      %s97 = sadd.s32 %s96, 1
      %p100 = scmp.eq.s32.totalorder %s20, 1
      %p101 = scmp.ne.s32.totalorder %s96, %s98
      %p102 = scmp.eq.s32.totalorder %s20, 0
      %p103 = por %p101, %p102
      %p104 = scmp.ne.s32.totalorder %s96, %s98
      %p105 = scmp.eq.s32.totalorder %s25, 1
      %p106 = por %p104, %p105
      %p107 = scmp.ne.s32.totalorder %s98, %s99
      %p108 = scmp.eq.s32.totalorder %s25, 0
      %p109 = por %p107, %p108
      %p110 = scmp.ne.s32.totalorder %s98, %s99
      %p111 = scmp.eq.s32.totalorder %s26, 1
      %p112 = por %p110, %p111
      %p114 = scmp.ne.s32.totalorder %s99, %s113
      %p115 = scmp.eq.s32.totalorder %s26, 0
      %p116 = por %p114, %p115
      %s118 = sadd.s32 %s117, 1
      %p121 = scmp.eq.s32.totalorder %s20, 1
      %p122 = scmp.ne.s32.totalorder %s117, %s119
      %p123 = scmp.eq.s32.totalorder %s20, 0
      %p124 = por %p122, %p123
      %p125 = scmp.ne.s32.totalorder %s117, %s119
      %p126 = scmp.eq.s32.totalorder %s25, 1
      %p127 = por %p125, %p126
      %p128 = scmp.ne.s32.totalorder %s119, %s120
      %p129 = scmp.eq.s32.totalorder %s25, 0
      %p130 = por %p128, %p129
      %p131 = scmp.ne.s32.totalorder %s119, %s120
      %p132 = scmp.eq.s32.totalorder %s26, 1
      %p133 = por %p131, %p132
      %p135 = scmp.ne.s32.totalorder %s120, %s134
      %p136 = scmp.eq.s32.totalorder %s26, 0
      %p137 = por %p135, %p136
      %s139 = sadd.s32 %s138, 1
      %p142 = scmp.eq.s32.totalorder %s20, 1
      %p143 = scmp.ne.s32.totalorder %s138, %s140
      %p144 = scmp.eq.s32.totalorder %s20, 0
      %p145 = por %p143, %p144
      %p146 = scmp.ne.s32.totalorder %s138, %s140
      %p147 = scmp.eq.s32.totalorder %s25, 1
      %p148 = por %p146, %p147
      %p149 = scmp.ne.s32.totalorder %s140, %s141
      %p150 = scmp.eq.s32.totalorder %s25, 0
      %p151 = por %p149, %p150
      %p152 = scmp.ne.s32.totalorder %s140, %s141
      %p153 = scmp.eq.s32.totalorder %s26, 1
      %p154 = por %p152, %p153
      %p156 = scmp.ne.s32.totalorder %s141, %s155
      %p157 = scmp.eq.s32.totalorder %s26, 0
      %p158 = por %p156, %p157
      %s160 = sadd.s32 %s159, 1
      %p163 = scmp.eq.s32.totalorder %s20, 1
      %p164 = scmp.ne.s32.totalorder %s159, %s161
      %p165 = scmp.eq.s32.totalorder %s20, 0
      %p166 = por %p164, %p165
      %p167 = scmp.ne.s32.totalorder %s159, %s161
      %p168 = scmp.eq.s32.totalorder %s25, 1
      %p169 = por %p167, %p168
      %p170 = scmp.ne.s32.totalorder %s161, %s162
      %p171 = scmp.eq.s32.totalorder %s25, 0
      %p172 = por %p170, %p171
      %p173 = scmp.ne.s32.totalorder %s161, %s162
      %p174 = scmp.eq.s32.totalorder %s26, 1
      %p175 = por %p173, %p174
      %p177 = scmp.ne.s32.totalorder %s162, %s176
      %p178 = scmp.eq.s32.totalorder %s26, 0
      %p179 = por %p177, %p178
      %s181 = sadd.s32 %s180, 1
      %p184 = scmp.eq.s32.totalorder %s20, 1
      %p185 = scmp.ne.s32.totalorder %s180, %s182
      %p186 = scmp.eq.s32.totalorder %s20, 0
      %p187 = por %p185, %p186
      %p188 = scmp.ne.s32.totalorder %s180, %s182
      %p189 = scmp.eq.s32.totalorder %s25, 1
      %p190 = por %p188, %p189
      %p191 = scmp.ne.s32.totalorder %s182, %s183
      %p192 = scmp.eq.s32.totalorder %s25, 0
      %p193 = por %p191, %p192
      %p194 = scmp.ne.s32.totalorder %s182, %s183
      %p195 = scmp.eq.s32.totalorder %s26, 1
      %p196 = por %p194, %p195
      %p198 = scmp.ne.s32.totalorder %s183, %s197
      %p199 = scmp.eq.s32.totalorder %s26, 0
      %p200 = por %p198, %p199
      %s201 = ssub.s32 %s20, %s27
      %p202 = scmp.eq.s32.totalorder %s201, 0
      %s204 = sadd.s32 %s203, 1
      %s205 = scalar_select %p202, %s203, %s204
      %p208 = pneg %p202
      %p209 = scmp.eq.s32.totalorder %s20, 1
      %p210 = por %p208, %p209
      %p211 = scmp.ne.s32.totalorder %s203, %s206
      %p212 = scmp.eq.s32.totalorder %s20, 0
      %p213 = por %p211, %p212
      %p214 = scmp.ne.s32.totalorder %s203, %s206
      %p215 = scmp.eq.s32.totalorder %s25, 1
      %p216 = por %p214, %p215
      %p217 = scmp.ne.s32.totalorder %s206, %s207
      %p218 = scmp.eq.s32.totalorder %s25, 0
      %p219 = por %p217, %p218
      %p220 = scmp.ne.s32.totalorder %s206, %s207
      %p221 = scmp.eq.s32.totalorder %s26, 1
      %p222 = por %p220, %p221
      %p224 = scmp.ne.s32.totalorder %s207, %s223
      %p225 = scmp.eq.s32.totalorder %s26, 0
      %p226 = por %p224, %p225
      %p227 = scmp.le.s32.totalorder 1, %s20
      %p228 = scmp.lt.s32.totalorder %s20, 3
      %p229 = pnand %p227, %p228
      %p230 = pneg %p229
      // Predicated region
      $region9: #{tpu_custom_call.1} parent=5 // pred_check
        _
      $region10: #{tpu_custom_call.1} parent=5 // pred_check_branch
        %232 = sbr.rel (%p229) target = $region12
      $region11: #{tpu_custom_call.1} parent=5 // pred_region
        %s233 = ssub.s32 %s20, 1
        // Predicated region
        $region13: #{tpu_custom_call.1} parent=11 // pred_check
          %p234 = pneg %p67
        $region14: #{tpu_custom_call.1} parent=11 // pred_check_branch
          %236 = sbr.rel (%p234) target = $region16
        $region15: #{tpu_custom_call.1} parent=11 // pred_region
          _
        $region16: #{tpu_custom_call.1} parent=11 // pred_fallthru
          _
        // Predicated region
        $region17: #{tpu_custom_call.1} parent=11 // pred_check
          %p237 = pneg %p88
        $region18: #{tpu_custom_call.1} parent=11 // pred_check_branch
          %239 = sbr.rel (%p237) target = $region20
        $region19: #{tpu_custom_call.1} parent=11 // pred_region
          _
        $region20: #{tpu_custom_call.1} parent=11 // pred_fallthru
          _
        // Predicated region
        $region21: #{tpu_custom_call.1} parent=11 // pred_check
          %p240 = pneg %p109
        $region22: #{tpu_custom_call.1} parent=11 // pred_check_branch
          %242 = sbr.rel (%p240) target = $region24
        $region23: #{tpu_custom_call.1} parent=11 // pred_region
          _
        $region24: #{tpu_custom_call.1} parent=11 // pred_fallthru
          _
        // Predicated region
        $region25: #{tpu_custom_call.1} parent=11 // pred_check
          %p243 = pneg %p130
        $region26: #{tpu_custom_call.1} parent=11 // pred_check_branch
          %245 = sbr.rel (%p243) target = $region28
        $region27: #{tpu_custom_call.1} parent=11 // pred_region
          _
        $region28: #{tpu_custom_call.1} parent=11 // pred_fallthru
          _
        // Predicated region
        $region29: #{tpu_custom_call.1} parent=11 // pred_check
          %p246 = pneg %p151
        $region30: #{tpu_custom_call.1} parent=11 // pred_check_branch
          %248 = sbr.rel (%p246) target = $region32
        $region31: #{tpu_custom_call.1} parent=11 // pred_region
          _
        $region32: #{tpu_custom_call.1} parent=11 // pred_fallthru
          _
        // Predicated region
        $region33: #{tpu_custom_call.1} parent=11 // pred_check
          %p249 = pneg %p172
        $region34: #{tpu_custom_call.1} parent=11 // pred_check_branch
          %251 = sbr.rel (%p249) target = $region36
        $region35: #{tpu_custom_call.1} parent=11 // pred_region
          _
        $region36: #{tpu_custom_call.1} parent=11 // pred_fallthru
          _
        // Predicated region
        $region37: #{tpu_custom_call.1} parent=11 // pred_check
          %p252 = pneg %p193
        $region38: #{tpu_custom_call.1} parent=11 // pred_check_branch
          %254 = sbr.rel (%p252) target = $region40
        $region39: #{tpu_custom_call.1} parent=11 // pred_region
          _
        $region40: #{tpu_custom_call.1} parent=11 // pred_fallthru
          _
      $region12: #{tpu_custom_call.1} parent=5 // pred_fallthru
        _
      %p255 = scmp.lt.s32.totalorder %s20, 2
      // Predicated region
      $region41: #{tpu_custom_call.1} parent=5 // pred_check
        %p256 = pneg %p255
      $region42: #{tpu_custom_call.1} parent=5 // pred_check_branch
        %258 = sbr.rel (%p256) target = $region44
      $region43: #{tpu_custom_call.1} parent=5 // pred_region
        // Predicated region
        $region45: #{tpu_custom_call.1} parent=43 // pred_check
          %p259 = pneg %p40
        $region46: #{tpu_custom_call.1} parent=43 // pred_check_branch
          %261 = sbr.rel (%p259) target = $region48
        $region47: #{tpu_custom_call.1} parent=43 // pred_region
          %s262 = sand.u32 %s30, 1
          %s263 = scalar_lea.sflag [#allocation3], %s262
          %s264 = sand.u32 %s30, 1
          %s265 = smul.addr %s264, 32
          %s266 = scalar_lea.vmem [#allocation2], %s265
          %s268 = ssub.s32 512, 512
          %269 = vsyncadd %s263, %s268
          %s270 = smul.addr %s20, 4
          %s271 = smul.addr %s270, 128
          %s272 = scalar_lea.hbm %s0, %s271
          %s273 = sshll.u32 %s266, 4
          %s274 = int_to_ptr.vmem [resolvable:$true] %s273
          %279 = dma.hbm_to_vmem [thread:$0]  %s272, 512, %s274, %s263, 256, 256, 16
        $region48: #{tpu_custom_call.1} parent=43 // pred_fallthru
          _
      $region44: #{tpu_custom_call.1} parent=5 // pred_fallthru
        _
      %p280 = scmp.le.s32.totalorder 1, %s20
      %p281 = scmp.lt.s32.totalorder %s20, 3
      %p282 = pnand %p280, %p281
      %p283 = pneg %p282
      // Predicated region
      $region49: #{tpu_custom_call.1} parent=5 // pred_check
        _
      $region50: #{tpu_custom_call.1} parent=5 // pred_check_branch
        %285 = sbr.rel (%p282) target = $region52
      $region51: #{tpu_custom_call.1} parent=5 // pred_region
        %s286 = ssub.s32 %s20, 1
        %s287 = sand.u32 %s33, 1
        %s288 = scalar_lea.sflag [#allocation3], %s287
        %s289 = sand.u32 %s33, 1
        %s290 = smul.addr %s289, 32
        %s291 = scalar_lea.vmem [#allocation2], %s290
        // Predicated region
        $region53: #{tpu_custom_call.1} parent=51 // pred_check
          %p292 = pneg %p46
        $region54: #{tpu_custom_call.1} parent=51 // pred_check_branch
          %294 = sbr.rel (%p292) target = $region56
        $region55: #{tpu_custom_call.1} parent=51 // pred_region
          %295 = dma.done %s288, 512
        $region56: #{tpu_custom_call.1} parent=51 // pred_fallthru
          _
        %s296 = sand.u32 %s33, 1
        %s297 = scalar_lea.sflag [#allocation3], %s296
        %s298 = sand.u32 %s33, 1
        %s299 = smul.addr %s298, 32
        %s300 = scalar_lea.vmem [#allocation2], %s299
        %p301 = pneg %p46
        %p302 = pneg %p43
        %p303 = pneg %p67
        %p304 = pneg %p64
        %p305 = pneg %p88
        %p306 = pneg %p85
        %p307 = pneg %p109
        %p308 = pneg %p106
        %p309 = pneg %p130
        %p310 = pneg %p127
        %p311 = pneg %p151
        %p312 = pneg %p148
        %p313 = pneg %p172
        %p314 = pneg %p169
        %p315 = pneg %p193
        %p316 = pneg %p190
        %p317 = pneg %p219
        %p318 = pneg %p216
        %s319 = sand.u32 %s206, 1
        %s320 = scalar_lea.sflag [#allocation4], %s319
        %s321 = sand.u32 %s206, 1
        %s322 = smul.addr %s321, 32
        %s323 = scalar_lea.vmem [#allocation5], %s322
        %v325 = vld [vmem:[%s291] sm:$0xff]
        %v326 = vld [vmem:[%s291 + $0x8] sm:$0xff]
        %327 = vst [vmem:[%s323] sm:$0xff] %v325
        %328 = vst [vmem:[%s323 + $0x8] sm:$0xff] %v326
        %v329 = vld [vmem:[%s291 + $0x10] sm:$0xff]
        %v330 = vld [vmem:[%s291 + $0x18] sm:$0xff]
        %v331 = vpack.c.bf16 %v329, %v329
        %v332 = vpack.c.bf16 %v330, %v330
        %v333 = vld [vmem:[%s1] sm:$0xf]
        %v334 = vld [vmem:[%s2] sm:$0xff]
        %336 = vset.pattern.permute.xlu0 0
        %337 = vperm.xlu0 %336, %v334
        %v338 = vpop.permute.xlu0 %337
        %vm340 = vcmask 64512
        %v342 = vsel %vm340, %v333, 0
        %vm344 = vcmask 1043456
        %v346 = vsel %vm344, %v331, 0
        %v349 = vsel %vm344, %v332, 0
        %351 = vmatprep.subr.bf16.mxu0 %v349
        %352 = vmatpush1.bf16.msra.mxu0 %v346
        %353 = vmatprep.subr.bf16.mxu0 0
        %354 = vmatpush1.bf16.msra.mxu0 0
        %355 = vmatprep.subr.bf16.mxu0 0
        %356 = vmatpush1.bf16.msra.mxu0 0
        %357 = vmatprep.subr.bf16.mxu0 0
        %358 = vmatpush1.bf16.msra.mxu0 0
        %359 = vmatprep.subr.bf16.mxu0 0
        %360 = vmatpush1.bf16.msra.mxu0 0
        %361 = vmatprep.subr.bf16.mxu0 0
        %362 = vmatpush1.bf16.msra.mxu0 0
        %363 = vmatprep.subr.bf16.mxu0 0
        %364 = vmatpush1.bf16.msra.mxu0 0
        %365 = vmatprep.subr.bf16.mxu0 0
        %366 = vmatpush1.bf16.msra.mxu0 0
        %367 = vmatprep.subr.bf16.mxu0 0
        %368 = vmatpush1.bf16.msra.mxu0 0
        %369 = vmatprep.subr.bf16.mxu0 0
        %370 = vmatpush1.bf16.msra.mxu0 0
        %371 = vmatprep.subr.bf16.mxu0 0
        %372 = vmatpush1.bf16.msra.mxu0 0
        %373 = vmatprep.subr.bf16.mxu0 0
        %374 = vmatpush1.bf16.msra.mxu0 0
        %375 = vmatprep.subr.bf16.mxu0 0
        %376 = vmatpush1.bf16.msra.mxu0 0
        %377 = vmatprep.subr.bf16.mxu0 0
        %378 = vmatpush1.bf16.msra.mxu0 0
        %379 = vmatprep.subr.bf16.mxu0 0
        %380 = vmatpush1.bf16.msra.mxu0 0
        %381 = vmatprep.subr.bf16.mxu0 0
        %382 = vmatpush1.bf16.msra.mxu0 0
        %383 = vmatprep.mubr.bf16.mxu0 0
        %384 = vmatmul.mubr.bf16.gmra.mrb[0].mxu0 %v342
        %v385 = vpop.f32.mrb[0].mxu0
        %v386 = vadd.f32 %v338, %v385
        %v387 = vpop.f32.mrb[0].mxu0
        %v388 = vadd.f32 %v338, %v387
        %v389 = vpop.f32.mrb[0].mxu0
        %v390 = vpop.f32.mrb[0].mxu0
        %391 = vdwg.mxu0
        %v392 = vmax.f32 %v386, 0.0
        %v393 = vmax.f32 %v388, 0.0
        %394 = vrot.lane.b32.xlu0 %v392, 17
        %v395 = vpop.permute.xlu0 %394
        %396 = vrot.lane.b32.xlu0 %v393, 17
        %v397 = vpop.permute.xlu0 %396
        %v398 = vlaneseq
        %v399 = vand.u32 %v398, 127
        %vm400 = vcmp.lt.s32.totalorder %v399, 17
        %v401 = vsel %vm400, %v395, %v397
        %v402 = vsel %vm400, %v397, %v395
        %v403 = vld [vmem:[%s3] sm:$0xff]
        %405 = vset.pattern.permute.xlu0 0
        %406 = vperm.xlu0 %405, %v403
        %v407 = vpop.permute.xlu0 %406
        %v409 = vmul.f32 %v402, %v407
        %v410 = vmul.f32 %v401, %v407
        %v411 = vld [vmem:[%s5] ss:$8 sm:$0x3]
        %v413 = vlaneseq
        %v414 = vshrl.u32 %v413, 7
        %v415 = vsub.s32 0, %v414
        %v416 = vrot.slane %v411, %v415
        %v417 = vlaneseq
        %v418 = vshrl.u32 %v417, 7
        %v419 = vsub.s32 1, %v418
        %v420 = vrot.slane %v411, %v419
        %v423 = vmul.f32 %v409, %v416
        %v424 = vmul.f32 %v410, %v420
        %v425 = vadd.f32 %v423, 0.0
        %v426 = vadd.f32 %v424, 0.0
        %427 = vrot.lane.b32.xlu0 %v392, 16
        %v428 = vpop.permute.xlu0 %427
        %429 = vrot.lane.b32.xlu0 %v393, 16
        %v430 = vpop.permute.xlu0 %429
        %vm431 = vcmp.lt.s32.totalorder %v399, 16
        %v432 = vsel %vm431, %v428, %v430
        %v433 = vsel %vm431, %v430, %v428
        %434 = vset.pattern.permute.xlu0 1
        %435 = vperm.xlu0 %434, %v403
        %v436 = vpop.permute.xlu0 %435
        %v438 = vmul.f32 %v433, %v436
        %v439 = vmul.f32 %v432, %v436
        %s440 = scalar_lea.vmem %s5, 1
        %v441 = vld [vmem:[%s440] ss:$8 sm:$0x3]
        %v443 = vlaneseq
        %v444 = vshrl.u32 %v443, 7
        %v445 = vsub.s32 0, %v444
        %v446 = vrot.slane %v441, %v445
        %v447 = vlaneseq
        %v448 = vshrl.u32 %v447, 7
        %v449 = vsub.s32 1, %v448
        %v450 = vrot.slane %v441, %v449
        %v453 = vmul.f32 %v438, %v446
        %v454 = vmul.f32 %v439, %v450
        %v455 = vadd.f32 %v425, %v453
        %v456 = vadd.f32 %v426, %v454
        %457 = vrot.lane.b32.xlu0 %v392, 15
        %v458 = vpop.permute.xlu0 %457
        %459 = vrot.lane.b32.xlu0 %v393, 15
        %v460 = vpop.permute.xlu0 %459
        %vm461 = vcmp.lt.s32.totalorder %v399, 15
        %v462 = vsel %vm461, %v458, %v460
        %v463 = vsel %vm461, %v460, %v458
        %464 = vset.pattern.permute.xlu0 2
        %465 = vperm.xlu0 %464, %v403
        %v466 = vpop.permute.xlu0 %465
        %v468 = vmul.f32 %v463, %v466
        %v469 = vmul.f32 %v462, %v466
        %s470 = scalar_lea.vmem %s5, 2
        %v471 = vld [vmem:[%s470] ss:$8 sm:$0x3]
        %v473 = vlaneseq
        %v474 = vshrl.u32 %v473, 7
        %v475 = vsub.s32 0, %v474
        %v476 = vrot.slane %v471, %v475
        %v477 = vlaneseq
        %v478 = vshrl.u32 %v477, 7
        %v479 = vsub.s32 1, %v478
        %v480 = vrot.slane %v471, %v479
        %v483 = vmul.f32 %v468, %v476
        %v484 = vmul.f32 %v469, %v480
        %v485 = vadd.f32 %v455, %v483
        %v486 = vadd.f32 %v456, %v484
        %487 = vrot.lane.b32.xlu0 %v392, 1
        %v488 = vpop.permute.xlu0 %487
        %489 = vrot.lane.b32.xlu0 %v393, 1
        %v490 = vpop.permute.xlu0 %489
        %vm491 = vcmp.lt.s32.totalorder %v399, 1
        %v492 = vsel %vm491, %v488, %v490
        %v493 = vsel %vm491, %v490, %v488
        %494 = vset.pattern.permute.xlu0 3
        %495 = vperm.xlu0 %494, %v403
        %v496 = vpop.permute.xlu0 %495
        %v498 = vmul.f32 %v493, %v496
        %v499 = vmul.f32 %v492, %v496
        %s500 = scalar_lea.vmem %s5, 3
        %v501 = vld [vmem:[%s500] ss:$8 sm:$0x3]
        %v503 = vlaneseq
        %v504 = vshrl.u32 %v503, 7
        %v505 = vsub.s32 0, %v504
        %v506 = vrot.slane %v501, %v505
        %v507 = vlaneseq
        %v508 = vshrl.u32 %v507, 7
        %v509 = vsub.s32 1, %v508
        %v510 = vrot.slane %v501, %v509
        %v513 = vmul.f32 %v498, %v506
        %v514 = vmul.f32 %v499, %v510
        %v515 = vadd.f32 %v485, %v513
        %v516 = vadd.f32 %v486, %v514
        %517 = vset.pattern.permute.xlu0 4
        %518 = vperm.xlu0 %517, %v403
        %v519 = vpop.permute.xlu0 %518
        %v521 = vmul.f32 %v392, %v519
        %v522 = vmul.f32 %v393, %v519
        %v523 = vadd.f32 %v515, %v521
        %v524 = vadd.f32 %v516, %v522
        %525 = vrot.lane.b32.xlu0 %v392, 127
        %v526 = vpop.permute.xlu0 %525
        %527 = vrot.lane.b32.xlu0 %v393, 127
        %v528 = vpop.permute.xlu0 %527
        %vm529 = vcmp.lt.s32.totalorder %v399, 127
        %v530 = vsel %vm529, %v526, %v528
        %v531 = vsel %vm529, %v528, %v526
        %532 = vset.pattern.permute.xlu0 5
        %533 = vperm.xlu0 %532, %v403
        %v534 = vpop.permute.xlu0 %533
        %v536 = vmul.f32 %v530, %v534
        %v537 = vmul.f32 %v531, %v534
        %s538 = scalar_lea.vmem %s5, 5
        %v539 = vld [vmem:[%s538] ss:$8 sm:$0x3]
        %v541 = vlaneseq
        %v542 = vshrl.u32 %v541, 7
        %v543 = vsub.s32 0, %v542
        %v544 = vrot.slane %v539, %v543
        %v545 = vlaneseq
        %v546 = vshrl.u32 %v545, 7
        %v547 = vsub.s32 1, %v546
        %v548 = vrot.slane %v539, %v547
        %v551 = vmul.f32 %v536, %v544
        %v552 = vmul.f32 %v537, %v548
        %v553 = vadd.f32 %v523, %v551
        %v554 = vadd.f32 %v524, %v552
        %555 = vrot.lane.b32.xlu0 %v392, 113
        %v556 = vpop.permute.xlu0 %555
        %557 = vrot.lane.b32.xlu0 %v393, 113
        %v558 = vpop.permute.xlu0 %557
        %vm559 = vcmp.lt.s32.totalorder %v399, 113
        %v560 = vsel %vm559, %v556, %v558
        %v561 = vsel %vm559, %v558, %v556
        %562 = vset.pattern.permute.xlu0 6
        %563 = vperm.xlu0 %562, %v403
        %v564 = vpop.permute.xlu0 %563
        %v566 = vmul.f32 %v560, %v564
        %v567 = vmul.f32 %v561, %v564
        %s568 = scalar_lea.vmem %s5, 6
        %v569 = vld [vmem:[%s568] ss:$8 sm:$0x3]
        %v571 = vlaneseq
        %v572 = vshrl.u32 %v571, 7
        %v573 = vsub.s32 0, %v572
        %v574 = vrot.slane %v569, %v573
        %v575 = vlaneseq
        %v576 = vshrl.u32 %v575, 7
        %v577 = vsub.s32 1, %v576
        %v578 = vrot.slane %v569, %v577
        %v581 = vmul.f32 %v566, %v574
        %v582 = vmul.f32 %v567, %v578
        %v583 = vadd.f32 %v553, %v581
        %v584 = vadd.f32 %v554, %v582
        %585 = vrot.lane.b32.xlu0 %v392, 112
        %v586 = vpop.permute.xlu0 %585
        %587 = vrot.lane.b32.xlu0 %v393, 112
        %v588 = vpop.permute.xlu0 %587
        %vm589 = vcmp.lt.s32.totalorder %v399, 112
        %v590 = vsel %vm589, %v586, %v588
        %v591 = vsel %vm589, %v588, %v586
        %592 = vset.pattern.permute.xlu0 7
        %593 = vperm.xlu0 %592, %v403
        %v594 = vpop.permute.xlu0 %593
        %v596 = vmul.f32 %v590, %v594
        %v597 = vmul.f32 %v591, %v594
        %s598 = scalar_lea.vmem %s5, 7
        %v599 = vld [vmem:[%s598] ss:$8 sm:$0x3]
        %v601 = vlaneseq
        %v602 = vshrl.u32 %v601, 7
        %v603 = vsub.s32 0, %v602
        %v604 = vrot.slane %v599, %v603
        %v605 = vlaneseq
        %v606 = vshrl.u32 %v605, 7
        %v607 = vsub.s32 1, %v606
        %v608 = vrot.slane %v599, %v607
        %v611 = vmul.f32 %v596, %v604
        %v612 = vmul.f32 %v597, %v608
        %v613 = vadd.f32 %v583, %v611
        %v614 = vadd.f32 %v584, %v612
        %615 = vrot.lane.b32.xlu0 %v392, 111
        %v616 = vpop.permute.xlu0 %615
        %617 = vrot.lane.b32.xlu0 %v393, 111
        %v618 = vpop.permute.xlu0 %617
        %vm619 = vcmp.lt.s32.totalorder %v399, 111
        %v620 = vsel %vm619, %v616, %v618
        %v621 = vsel %vm619, %v618, %v616
        %622 = vset.pattern.permute.xlu0 8
        %623 = vperm.xlu0 %622, %v403
        %v624 = vpop.permute.xlu0 %623
        %v626 = vmul.f32 %v620, %v624
        %v627 = vmul.f32 %v621, %v624
        %s628 = scalar_lea.vmem %s5, 16
        %v629 = vld [vmem:[%s628] ss:$8 sm:$0x3]
        %v631 = vlaneseq
        %v632 = vshrl.u32 %v631, 7
        %v633 = vsub.s32 0, %v632
        %v634 = vrot.slane %v629, %v633
        %v635 = vlaneseq
        %v636 = vshrl.u32 %v635, 7
        %v637 = vsub.s32 1, %v636
        %v638 = vrot.slane %v629, %v637
        %v641 = vmul.f32 %v626, %v634
        %v642 = vmul.f32 %v627, %v638
        %v643 = vadd.f32 %v613, %v641
        %v644 = vadd.f32 %v614, %v642
        %v645 = vld [vmem:[%s4] sm:$0xff]
        %647 = vset.pattern.permute.xlu0 0
        %648 = vperm.xlu0 %647, %v645
        %v649 = vpop.permute.xlu0 %648
        %v651 = vadd.f32 %v643, %v649
        %v652 = vadd.f32 %v644, %v649
        %v653 = vld [vmem:[%s6] sm:$0xf]
        %v654 = vpack.c.bf16 %v651, %v651
        %v655 = vpack.c.bf16 %v652, %v652
        %v656 = vld [vmem:[%s7] sm:$0xff]
        %658 = vset.pattern.permute.xlu0 0
        %659 = vperm.xlu0 %658, %v656
        %v660 = vpop.permute.xlu0 %659
        %v663 = vsel %vm340, %v653, 0
        %v666 = vsel %vm344, %v654, 0
        %v669 = vsel %vm344, %v655, 0
        %671 = vmatprep.subr.bf16.mxu0 %v669
        %672 = vmatpush1.bf16.msra.mxu0 %v666
        %673 = vmatprep.subr.bf16.mxu0 0
        %674 = vmatpush1.bf16.msra.mxu0 0
        %675 = vmatprep.subr.bf16.mxu0 0
        %676 = vmatpush1.bf16.msra.mxu0 0
        %677 = vmatprep.subr.bf16.mxu0 0
        %678 = vmatpush1.bf16.msra.mxu0 0
        %679 = vmatprep.subr.bf16.mxu0 0
        %680 = vmatpush1.bf16.msra.mxu0 0
        %681 = vmatprep.subr.bf16.mxu0 0
        %682 = vmatpush1.bf16.msra.mxu0 0
        %683 = vmatprep.subr.bf16.mxu0 0
        %684 = vmatpush1.bf16.msra.mxu0 0
        %685 = vmatprep.subr.bf16.mxu0 0
        %686 = vmatpush1.bf16.msra.mxu0 0
        %687 = vmatprep.subr.bf16.mxu0 0
        %688 = vmatpush1.bf16.msra.mxu0 0
        %689 = vmatprep.subr.bf16.mxu0 0
        %690 = vmatpush1.bf16.msra.mxu0 0
        %691 = vmatprep.subr.bf16.mxu0 0
        %692 = vmatpush1.bf16.msra.mxu0 0
        %693 = vmatprep.subr.bf16.mxu0 0
        %694 = vmatpush1.bf16.msra.mxu0 0
        %695 = vmatprep.subr.bf16.mxu0 0
        %696 = vmatpush1.bf16.msra.mxu0 0
        %697 = vmatprep.subr.bf16.mxu0 0
        %698 = vmatpush1.bf16.msra.mxu0 0
        %699 = vmatprep.subr.bf16.mxu0 0
        %700 = vmatpush1.bf16.msra.mxu0 0
        %701 = vmatprep.subr.bf16.mxu0 0
        %702 = vmatpush1.bf16.msra.mxu0 0
        %703 = vmatprep.mubr.bf16.mxu0 0
        %704 = vmatmul.mubr.bf16.gmra.mrb[0].mxu0 %v663
        %v705 = vpop.f32.mrb[0].mxu0
        %v706 = vadd.f32 %v660, %v705
        %v707 = vpop.f32.mrb[0].mxu0
        %v708 = vadd.f32 %v660, %v707
        %v709 = vpop.f32.mrb[0].mxu0
        %v710 = vpop.f32.mrb[0].mxu0
        %711 = vdwg.mxu0
        %v712 = vmax.f32 %v706, 0.0
        %v713 = vmax.f32 %v708, 0.0
        %714 = vst [vmem:[%s323 + $0x10] sm:$0xff] %v712
        %715 = vst [vmem:[%s323 + $0x18] sm:$0xff] %v713
        %s716 = sand.u32 %s206, 1
        %s717 = scalar_lea.sflag [#allocation4], %s716
        %s718 = sand.u32 %s206, 1
        %s719 = smul.addr %s718, 32
        %s720 = scalar_lea.vmem [#allocation5], %s719
        // Predicated region
        $region57: #{tpu_custom_call.1} parent=51 // pred_check
          %p721 = pneg %p216
        $region58: #{tpu_custom_call.1} parent=51 // pred_check_branch
          %723 = sbr.rel (%p721) target = $region60
        $region59: #{tpu_custom_call.1} parent=51 // pred_region
          %s725 = ssub.s32 512, 512
          %726 = vsyncadd %s717, %s725
          %s727 = smul.addr %s25, 4
          %s728 = smul.addr %s727, 128
          %s729 = scalar_lea.hbm %s8, %s728
          %s731 = sshll.u32 %s720, 4
          %s732 = int_to_ptr.vmem [resolvable:$true] %s731
          %734 = dma.vmem_to_hbm [thread:$0]  %s732, 512, %s729, %s717
        $region60: #{tpu_custom_call.1} parent=51 // pred_fallthru
          _
      $region52: #{tpu_custom_call.1} parent=5 // pred_fallthru
        _
      %p735 = scmp.le.s32.totalorder 2, %s20
      // Predicated region
      $region61: #{tpu_custom_call.1} parent=5 // pred_check
        %p736 = pneg %p735
      $region62: #{tpu_custom_call.1} parent=5 // pred_check_branch
        %738 = sbr.rel (%p736) target = $region64
      $region63: #{tpu_custom_call.1} parent=5 // pred_region
        %s739 = ssub.s32 %s20, 2
        // Predicated region
        $region65: #{tpu_custom_call.1} parent=63 // pred_check
          %p740 = pneg %p222
        $region66: #{tpu_custom_call.1} parent=63 // pred_check_branch
          %742 = sbr.rel (%p740) target = $region68
        $region67: #{tpu_custom_call.1} parent=63 // pred_region
          %s743 = sand.u32 %s207, 1
          %s744 = scalar_lea.sflag [#allocation4], %s743
          %s745 = sand.u32 %s207, 1
          %s746 = smul.addr %s745, 32
          %s747 = scalar_lea.vmem [#allocation5], %s746
          %748 = dma.done %s744, 512
        $region68: #{tpu_custom_call.1} parent=63 // pred_fallthru
          _
      $region64: #{tpu_custom_call.1} parent=5 // pred_fallthru
        _
    $region6: #{tpu_custom_call.1} parent=1 // loop_footer
      %s24 = sadd.s32 1, %s20
    $region7: #{tpu_custom_call.1} parent=1 // loop_footer_branch
      %19 = sbr.rel target = $region3
    $region8: #{tpu_custom_call.1} parent=1 // loop_exit
      _
    %749 = vsyncpa [#allocation3], 1
    %s750 = scalar_lea.sflag [#allocation3], 1
    %751 = vsyncpa %s750, 1
    %752 = vsyncpa [#allocation4], 1
    %s753 = scalar_lea.sflag [#allocation4], 1
    %754 = vsyncpa %s753, 1

</llo_original>
